<compile_context>
chip_gen: v6e
topology: v6e:2x2x1
jax: 0.10.0
libtpu: 0.0.40
codegen_flags: <defaults>
</compile_context>

<pallas_src>
import functools

import jax
import jax.numpy as jnp
from jax.experimental import pallas as pl
from jax.experimental.pallas import tpu as pltpu


_VMEM_SAFE_CAP = 48 << 20      # < 64 MiB/TC on v7x; safe on v5e/v6e/v7x
_VMEM_FLOOR = 32 << 20         # don't lower the scoped limit below ~default
_BLOCK_BYTE_BUDGET = 4 << 20   # ~2-4 MiB blocks reach the HBM-bandwidth knee
_TARGET_GRID_STEPS = 8         # >= 4 pipelined steps per TC under megacore


def _layernorm_kernel(x_ref, w_ref, b_ref, o_ref, *, eps: float, inv_h: float,
                      low_precision_apply: bool):
    # x_ref: (tr, H) block; w_ref/b_ref: (1, H).
    # Statistics (mean, centered variance) always accumulate in f32.
    xf = x_ref[...].astype(jnp.float32)
    mean = jnp.sum(xf, axis=-1, keepdims=True) * inv_h
    xc = xf - mean
    var = jnp.sum(xc * xc, axis=-1, keepdims=True) * inv_h
    inv = jax.lax.rsqrt(var + eps)          # EUP rsqrt (free slot)
    if low_precision_apply:
        # bf16/f16 input: apply chain in the input dtype (stats stay f32).
        lp = o_ref.dtype
        y = (x_ref[...] - mean.astype(lp)) * inv.astype(lp)
        o_ref[...] = y * w_ref[...] + b_ref[...]
    else:
        o_ref[...] = ((xc * inv) * w_ref[...] + b_ref[...]).astype(o_ref.dtype)


def _pick_row_tile(rows: int, h: int, itemsize: int) -> int:
    """Row tile from a byte budget + a minimum-grid-steps floor."""
    # Sublane packing of the input dtype: f32 -> 8, bf16/f16 -> 16, 8-bit -> 32.
    if itemsize >= 4:
        sub = 8
    elif itemsize == 2:
        sub = 16
    else:
        sub = 32
    if rows <= sub:
        return rows  # full-extent block

    # Byte budget for one x block (LayerNorm is purely memory bound).
    tr = (_BLOCK_BYTE_BUDGET // max(1, h * itemsize)) // sub * sub
    tr = max(sub, tr)

    # Keep the parallel grid at >= ~8 steps when rows allow, so each
    # TensorCore (2 on v7x) sees several steps and double-buffering overlaps
    # DMA with compute.  Skip the clamp when rows are too small for it.
    step_tr = (rows // _TARGET_GRID_STEPS) // sub * sub
    if step_tr >= sub:
        tr = min(tr, step_tr)

    if tr >= rows:
        return rows
    return tr


def _vmem_limit_bytes(tr: int, h: int, in_itemsize: int, wb_itemsize: int) -> int:
    """Scoped-VMEM limit derived from the pipelined working set."""
    in_block = tr * h * in_itemsize
    out_block = in_block
    f32_block = tr * h * 4
    wb = 2 * 2 * h * wb_itemsize                    # w + b, double-buffered
    working = 2 * in_block + 2 * out_block + 3 * f32_block + wb + (1 << 20)
    return int(min(max(working, _VMEM_FLOOR), _VMEM_SAFE_CAP))


def layer_norm(x, weight=None, bias=None, *, eps: float = 1e-5,
               normalized_shape=None):
    """LayerNorm over the trailing axes of x.

    weight/bias have shape `normalized_shape` (inferred from weight if given).
    weight=None / bias=None reproduce elementwise_affine=False.
    """
    if weight is not None:
        normalized_shape = tuple(weight.shape)
    elif normalized_shape is None:
        normalized_shape = (x.shape[-1],)
    n_norm = len(normalized_shape)
    assert tuple(x.shape[-n_norm:]) == tuple(normalized_shape), (
        "trailing dims of x must equal normalized_shape")

    H = 1
    for d in normalized_shape:
        H *= int(d)
    rows = 1
    for d in x.shape[:-n_norm]:
        rows *= int(d)
    x2 = x.reshape(rows, H)

    if weight is None:
        weight = jnp.ones((H,), dtype=x.dtype)
    if bias is None:
        bias = jnp.zeros((H,), dtype=x.dtype)

    in_itemsize = jnp.dtype(x.dtype).itemsize
    low_precision_apply = (in_itemsize == 2 and
                           jnp.issubdtype(x.dtype, jnp.floating))
    wb_dtype = x.dtype if low_precision_apply else jnp.float32
    w2 = weight.reshape(1, H).astype(wb_dtype)
    b2 = bias.reshape(1, H).astype(wb_dtype)

    tr = _pick_row_tile(rows, H, in_itemsize)
    vmem_limit = _vmem_limit_bytes(tr, H, in_itemsize,
                                   jnp.dtype(wb_dtype).itemsize)
    grid = (pl.cdiv(rows, tr),)

    out = pl.pallas_call(
        functools.partial(
            _layernorm_kernel,
            eps=float(eps),
            inv_h=1.0 / float(H),
            low_precision_apply=low_precision_apply,
        ),
        out_shape=jax.ShapeDtypeStruct((rows, H), x.dtype),
        grid_spec=pltpu.PrefetchScalarGridSpec(
            num_scalar_prefetch=0,
            grid=grid,
            in_specs=[
                pl.BlockSpec((tr, H), lambda i: (i, 0)),
                pl.BlockSpec((1, H), lambda i: (0, 0)),
                pl.BlockSpec((1, H), lambda i: (0, 0)),
            ],
            out_specs=pl.BlockSpec((tr, H), lambda i: (i, 0)),
        ),
        compiler_params=pltpu.CompilerParams(
            dimension_semantics=("parallel",),
            vmem_limit_bytes=vmem_limit,
        ),
    )(x2, w2, b2)

    return out.reshape(x.shape)


if __name__ == "__main__":
    key = jax.random.PRNGKey(0)
    B, S, H = 2, 8, 32
    kx, kw, kb = jax.random.split(key, 3)
    x = jax.random.normal(kx, (B, S, H), dtype=jnp.float32)
    # torch.nn.LayerNorm default init is weight=1, bias=0; use deterministic
    # random values here to exercise the affine path.
    weight = 1.0 + 0.1 * jax.random.normal(kw, (H,), dtype=jnp.float32)
    bias = 0.1 * jax.random.normal(kb, (H,), dtype=jnp.float32)

    out = layer_norm(x, weight, bias, eps=1e-5)
    out = jax.block_until_ready(out)

    # Reference check (plain JAX) for sanity.
    mean = jnp.mean(x, axis=-1, keepdims=True)
    var = jnp.mean((x - mean) ** 2, axis=-1, keepdims=True)
    ref = (x - mean) / jnp.sqrt(var + 1e-5) * weight + bias
    assert jnp.allclose(out, ref, atol=1e-5, rtol=1e-5)

    print("KERNEL_OK")
</pallas_src>

<mosaic_0001>
module attributes {stable_mosaic.version = 11 : i64} {
  func.func @_layernorm_kernel(%arg0: i32, %arg1: memref<16x32xf32, #tpu.memory_space<vmem>>, %arg2: memref<1x32xf32, #tpu.memory_space<vmem>>, %arg3: memref<1x32xf32, #tpu.memory_space<vmem>>, %arg4: memref<16x32xf32, #tpu.memory_space<vmem>>) attributes {dimension_semantics = [#tpu.dimension_semantics<parallel>], iteration_bounds = array<i64: 1>, scalar_prefetch = 0 : i64, scratch_operands = 0 : i64, tpu.core_type = #tpu.core_type<tc>, window_params = [{transform_indices = @transform_0, window_bounds = array<i64: 16, 32>}, {pipeline_mode = #tpu.pipeline_mode<synchronous>, transform_indices = @transform_1, window_bounds = array<i64: 1, 32>}, {pipeline_mode = #tpu.pipeline_mode<synchronous>, transform_indices = @transform_2, window_bounds = array<i64: 1, 32>}, {transform_indices = @transform_3, window_bounds = array<i64: 16, 32>}]} {
    %c0 = arith.constant 0 : index
    %c0_0 = arith.constant 0 : index
    %0 = vector.load %arg1[%c0, %c0_0] : memref<16x32xf32, #tpu.memory_space<vmem>>, vector<16x32xf32>
    %cst = arith.constant dense<0.000000e+00> : vector<16xf32>
    %1 = vector.multi_reduction <add>, %0, %cst [1] : vector<16x32xf32> to vector<16xf32>
    %2 = vector.shape_cast %1 : vector<16xf32> to vector<16x1xf32>
    %cst_1 = arith.constant 3.125000e-02 : f32
    %3 = vector.broadcast %cst_1 : f32 to vector<16x1xf32>
    %4 = arith.mulf %2, %3 : vector<16x1xf32>
    %5 = vector.broadcast %4 : vector<16x1xf32> to vector<16x32xf32>
    %6 = arith.subf %0, %5 : vector<16x32xf32>
    %7 = arith.mulf %6, %6 : vector<16x32xf32>
    %cst_2 = arith.constant dense<0.000000e+00> : vector<16xf32>
    %8 = vector.multi_reduction <add>, %7, %cst_2 [1] : vector<16x32xf32> to vector<16xf32>
    %9 = vector.shape_cast %8 : vector<16xf32> to vector<16x1xf32>
    %cst_3 = arith.constant 3.125000e-02 : f32
    %10 = vector.broadcast %cst_3 : f32 to vector<16x1xf32>
    %11 = arith.mulf %9, %10 : vector<16x1xf32>
    %cst_4 = arith.constant 9.99999974E-6 : f32
    %12 = vector.broadcast %cst_4 : f32 to vector<16x1xf32>
    %13 = arith.addf %11, %12 : vector<16x1xf32>
    %14 = math.rsqrt %13 : vector<16x1xf32>
    %15 = vector.broadcast %14 : vector<16x1xf32> to vector<16x32xf32>
    %16 = arith.mulf %6, %15 : vector<16x32xf32>
    %c0_5 = arith.constant 0 : index
    %c0_6 = arith.constant 0 : index
    %17 = vector.load %arg2[%c0_5, %c0_6] : memref<1x32xf32, #tpu.memory_space<vmem>>, vector<1x32xf32>
    %18 = vector.broadcast %17 : vector<1x32xf32> to vector<16x32xf32>
    %19 = arith.mulf %16, %18 : vector<16x32xf32>
    %c0_7 = arith.constant 0 : index
    %c0_8 = arith.constant 0 : index
    %20 = vector.load %arg3[%c0_7, %c0_8] : memref<1x32xf32, #tpu.memory_space<vmem>>, vector<1x32xf32>
    %21 = vector.broadcast %20 : vector<1x32xf32> to vector<16x32xf32>
    %22 = arith.addf %19, %21 : vector<16x32xf32>
    %c0_9 = arith.constant 0 : index
    %c0_10 = arith.constant 0 : index
    %23 = vector.load %arg4[%c0_9, %c0_10] : memref<16x32xf32, #tpu.memory_space<vmem>>, vector<16x32xf32>
    tpu.vector_store %arg4[%c0_9, %c0_10], %22 {strides = array<i32>} : memref<16x32xf32, #tpu.memory_space<vmem>>, vector<16x32xf32>,
    return
  }
  func.func @transform_0(%arg0: i32) -> (i32, i32) {
    %c0_i32 = arith.constant 0 : i32
    %c0_i32_0 = arith.constant 0 : i32
    return %arg0, %c0_i32 : i32, i32
  }
  func.func @transform_1(%arg0: i32) -> (i32, i32) {
    %c0_i32 = arith.constant 0 : i32
    %c0_i32_0 = arith.constant 0 : i32
    %c0_i32_1 = arith.constant 0 : i32
    return %c0_i32, %c0_i32_0 : i32, i32
  }
  func.func @transform_2(%arg0: i32) -> (i32, i32) {
    %c0_i32 = arith.constant 0 : i32
    %c0_i32_0 = arith.constant 0 : i32
    %c0_i32_1 = arith.constant 0 : i32
    return %c0_i32, %c0_i32_0 : i32, i32
  }
  func.func @transform_3(%arg0: i32) -> (i32, i32) {
    %c0_i32 = arith.constant 0 : i32
    %c0_i32_0 = arith.constant 0 : i32
    return %arg0, %c0_i32 : i32, i32
  }
}

</mosaic_0001>

<llo_original>
// kernel: tpu_custom_call.1
$region0: #{tpu_custom_call.1}
  #allocation0 [shape = 'u32[]', space=smem, size = 0x4, offset = 0x4, fixed_abs, tag = 'smem constant byte address 0x4 - core index']
  #allocation1 [shape = 'u32[144,128]{1,0:T(1,128)}', space=vmem, size = 0x12000, scoped, tag = 'internal scratch']
  %s0 = inlined_call_operand.hbm [shape: f32[16,32], index: 0, kind: input, shape index: {}]
  %s1 = inlined_call_operand.vmem [shape: f32[1,32], index: 1, kind: input, shape index: {}]
  %s2 = inlined_call_operand.vmem [shape: f32[1,32], index: 2, kind: input, shape index: {}]
  %s3 = inlined_call_operand.hbm [shape: f32[16,32], index: 3, kind: output, shape index: {}]
  %s4 = sld [smem:[#allocation0]]
  $region26: #{tpu_custom_call.1} parent=0
    _
  %s6 = ssub.s32 1, %s4
  %s7 = scalar_select 0, %s6, %s4
  $region1: #{tpu_custom_call.1} parent=0
    #allocation2 [shape = 'u8[8192]{0}', space=vmem, size = 0x2000, scoped, tag = 'input window, operand 0, single buffered']
    #allocation3 [shape = 's32[1]{0}', space=sflag, size = 0x4, scoped, tag = 'scoped memory for tpu_custom_call.1']
    #allocation4 [shape = 's32[1]{0}', space=sflag, size = 0x4, scoped, tag = 'scoped memory for tpu_custom_call.1']
    #allocation5 [shape = 'u8[8192]{0}', space=vmem, size = 0x2000, scoped, tag = 'output window, operand 0, single buffered']
    %8 = vsyncpa [#allocation3], 0
    %9 = vsyncpa [#allocation4], 0
    // Predicated region
    $region2: #{tpu_custom_call.1} parent=1 // pred_check
      _
    $region3: #{tpu_custom_call.1} parent=1 // pred_check_branch
      %11 = sbr.rel (0) target = $region5
    $region4: #{tpu_custom_call.1} parent=1 // pred_region
      %s13 = ssub.s32 256, 256
      %14 = vsyncadd [#allocation3], %s13
      %s15 = sshll.u32 [#allocation2], 4
      %s16 = int_to_ptr.vmem [resolvable:$true] %s15
      %21 = dma.hbm_to_vmem [thread:$0]  %s0, 256, %s16, [#allocation3], 128, 128, 8
    $region5: #{tpu_custom_call.1} parent=1 // pred_fallthru
      _
    // Predicated region
    $region6: #{tpu_custom_call.1} parent=1 // pred_check
      _
    $region7: #{tpu_custom_call.1} parent=1 // pred_check_branch
      %23 = sbr.rel (0) target = $region9
    $region8: #{tpu_custom_call.1} parent=1 // pred_region
      _
    $region9: #{tpu_custom_call.1} parent=1 // pred_fallthru
      _
    // Predicated region
    $region10: #{tpu_custom_call.1} parent=1 // pred_check
      _
    $region11: #{tpu_custom_call.1} parent=1 // pred_check_branch
      %25 = sbr.rel (0) target = $region13
    $region12: #{tpu_custom_call.1} parent=1 // pred_region
      _
    $region13: #{tpu_custom_call.1} parent=1 // pred_fallthru
      _
    // Predicated region
    $region14: #{tpu_custom_call.1} parent=1 // pred_check
      _
    $region15: #{tpu_custom_call.1} parent=1 // pred_check_branch
      %27 = sbr.rel (0) target = $region17
    $region16: #{tpu_custom_call.1} parent=1 // pred_region
      %28 = dma.done [#allocation3], 256
    $region17: #{tpu_custom_call.1} parent=1 // pred_fallthru
      _
    %v29 = vld [vmem:[#allocation2] sm:$0xff]
    %v30 = vld [vmem:[#allocation2 + $0x8] sm:$0xff]
    %vm31 = vcmask 261120
    %v32 = vsel %vm31, %v29, 0.0
    %33 = vadd.xlane.f32.xlu0 %v32
    %v34 = vpop.xlane.xlu0 %33
    %v35 = vsel %vm31, %v30, 0.0
    %36 = vadd.xlane.f32.xlu0 %v35
    %v37 = vpop.xlane.xlu0 %36
    %v38 = vmul.f32 %v34, 0.03125
    %v39 = vmul.f32 %v37, 0.03125
    %v40 = vsub.f32 %v29, %v38
    %v41 = vsub.f32 %v30, %v39
    %v42 = vmul.f32 %v40, %v40
    %v43 = vmul.f32 %v41, %v41
    %v44 = vsel %vm31, %v42, 0.0
    %45 = vadd.xlane.f32.xlu0 %v44
    %v46 = vpop.xlane.xlu0 %45
    %v47 = vsel %vm31, %v43, 0.0
    %48 = vadd.xlane.f32.xlu0 %v47
    %v49 = vpop.xlane.xlu0 %48
    %v50 = vmul.f32 %v46, 0.03125
    %v51 = vmul.f32 %v49, 0.03125
    %v52 = vadd.f32 %v50, 1e-05
    %v53 = vadd.f32 %v51, 1e-05
    %v54 = vrsqrt.pop %v52
    %v55 = vrsqrt.pop %v53
    %v56 = vmul.f32 %v40, %v54
    %v57 = vmul.f32 %v41, %v55
    %v58 = vld [vmem:[%s1] sm:$0x1]
    %v60 = vlaneseq
    %v61 = vshrl.u32 %v60, 7
    %v62 = vsub.s32 0, %v61
    %v63 = vrot.slane %v58, %v62
    %v65 = vmul.f32 %v56, %v63
    %v66 = vmul.f32 %v57, %v63
    %v67 = vld [vmem:[%s2] sm:$0x1]
    %v69 = vlaneseq
    %v70 = vshrl.u32 %v69, 7
    %v71 = vsub.s32 0, %v70
    %v72 = vrot.slane %v67, %v71
    %v74 = vadd.f32 %v65, %v72
    %v75 = vadd.f32 %v66, %v72
    %76 = vst.msk [vmem:[#allocation5] sm:$0xff] %vm31, %v74
    %77 = vst.msk [vmem:[#allocation5 + $0x8] sm:$0xff] %vm31, %v75
    // Predicated region
    $region18: #{tpu_custom_call.1} parent=1 // pred_check
      _
    $region19: #{tpu_custom_call.1} parent=1 // pred_check_branch
      %79 = sbr.rel (0) target = $region21
    $region20: #{tpu_custom_call.1} parent=1 // pred_region
      %s81 = ssub.s32 256, 256
      %82 = vsyncadd [#allocation4], %s81
      %s83 = sshll.u32 [#allocation5], 4
      %s84 = int_to_ptr.vmem [resolvable:$true] %s83
      %89 = dma.vmem_to_hbm [thread:$0]  %s84, 256, %s3, [#allocation4], 128, 128, 8
    $region21: #{tpu_custom_call.1} parent=1 // pred_fallthru
      _
    // Predicated region
    $region22: #{tpu_custom_call.1} parent=1 // pred_check
      _
    $region23: #{tpu_custom_call.1} parent=1 // pred_check_branch
      %91 = sbr.rel (0) target = $region25
    $region24: #{tpu_custom_call.1} parent=1 // pred_region
      %92 = dma.done [#allocation4], 256
    $region25: #{tpu_custom_call.1} parent=1 // pred_fallthru
      _
    %93 = vsyncpa [#allocation3], 1
    %94 = vsyncpa [#allocation4], 1

</llo_original>
